<compile_context>
chip_gen: v7x
topology: tpu7x:2x2x1
jax: 0.10.0
libtpu: 0.0.40
codegen_flags: <defaults>
</compile_context>

<pallas_src>
import functools

import jax
import jax.numpy as jnp
from jax.experimental import pallas as pl
from jax.experimental.pallas import tpu as pltpu


def _cw_loss_kernel(targeted: bool, num_classes: int, class_tile: int,
                    x_ref, y_ref, out_ref, max_sc, tgt_sc):
    # x_ref:   (TB, TC) logits tile (native dtype)
    # y_ref:   (TB, 1)  int32 labels
    # out_ref: (TB, 1)  float32 per-row CW loss
    # max_sc:  (TB, 1)  f32 running max over non-target classes
    # tgt_sc:  (TB, 1)  f32 accumulated target logit
    k = pl.program_id(1)

    @pl.when(k == 0)
    def _init():
        max_sc[...] = jnp.full_like(max_sc, -jnp.inf)
        tgt_sc[...] = jnp.zeros_like(tgt_sc)

    x = x_ref[...].astype(jnp.float32)                       # cast in-register
    labels = y_ref[...]                                      # (TB, 1) int32

    # Global class index of each column in this tile.
    col = k * class_tile + jax.lax.broadcasted_iota(jnp.int32, x.shape, 1)
    onehot = col == labels                                   # target column
    valid = col < num_classes                                # mask class padding

    # Accumulate the target logit (at most one hit across all class tiles).
    tgt_sc[...] += jnp.sum(jnp.where(onehot, x, 0.0), axis=-1, keepdims=True)

    # Running max over valid, non-target classes.
    masked = jnp.where(jnp.logical_and(valid, jnp.logical_not(onehot)),
                       x, jnp.full_like(x, -jnp.inf))
    max_sc[...] = jnp.maximum(max_sc[...],
                              jnp.max(masked, axis=-1, keepdims=True))

    @pl.when(k == pl.num_programs(1) - 1)
    def _finalize():
        # max_{j!=y}(x_j - x_y) == max_{j!=y}(x_j) - x_y
        loss = max_sc[...] - tgt_sc[...]
        out_ref[...] = ((-loss) if targeted else loss).astype(out_ref.dtype)


def cw_loss(x, y, *, targeted: bool = False,
            batch_tile: int | None = None, class_tile: int | None = None):
    """x: (B, C) logits (any float dtype), y: (B,) int labels -> (B,) f32."""
    B, C = x.shape
    y2 = y.reshape(B, 1).astype(jnp.int32)
    itemsize = jnp.dtype(x.dtype).itemsize

    # --- class tile: full C if small, else a 128-multiple chunk ------------
    if class_tile is None:
        class_tile = C if C <= 2048 else 2048
    if class_tile != C:
        class_tile = max(128, (class_tile // 128) * 128)     # lane-aligned

    # --- batch tile: large multiple of 8, <= ~4 MiB per block --------------
    # (double-buffered x block <= ~8 MiB: safe on v5e/v6e/v7x VMEM budgets)
    if batch_tile is None:
        budget = 4 * 1024 * 1024
        rows = max(8, budget // (class_tile * itemsize))
        batch_tile = min(B, 1024, rows)
    if batch_tile != B:
        batch_tile = max(8, (batch_tile // 8) * 8)           # sublane-aligned
        batch_tile = min(batch_tile, B)

    grid = (pl.cdiv(B, batch_tile), pl.cdiv(C, class_tile))

    cost = pl.CostEstimate(
        flops=3 * B * C,
        transcendentals=0,
        bytes_accessed=B * C * itemsize + B * 4 + B * 4,
    )

    out = pl.pallas_call(
        functools.partial(_cw_loss_kernel, targeted, C, class_tile),
        out_shape=jax.ShapeDtypeStruct((B, 1), jnp.float32),
        grid=grid,
        in_specs=[
            pl.BlockSpec((batch_tile, class_tile), lambda i, k: (i, k)),
            pl.BlockSpec((batch_tile, 1), lambda i, k: (i, 0)),
        ],
        out_specs=pl.BlockSpec((batch_tile, 1), lambda i, k: (i, 0)),
        scratch_shapes=[
            pltpu.VMEM((batch_tile, 1), jnp.float32),   # running max
            pltpu.VMEM((batch_tile, 1), jnp.float32),   # target logit
        ],
        compiler_params=pltpu.CompilerParams(
            dimension_semantics=("parallel", "arbitrary"),
            vmem_limit_bytes=32 * 1024 * 1024,
        ),
        cost_estimate=cost,
    )(x, y2)
    return out[:, 0]


def _reference(x, y, targeted=False):
    # Pure-JAX reference mirroring the PyTorch module (compute in f32).
    xf = x.astype(jnp.float32)
    C = x.shape[-1]
    onehot = jax.nn.one_hot(y, C, dtype=jnp.bool_)
    target = jnp.sum(jnp.where(onehot, xf, 0.0), axis=-1, keepdims=True)
    diff = jnp.where(onehot, -jnp.inf, xf - target)
    loss = jnp.max(diff, axis=-1)
    return -loss if targeted else loss


if __name__ == "__main__":
    key = jax.random.PRNGKey(0)
    kx, ky, kx2, ky2 = jax.random.split(key, 4)

    # Small smoke test (single tile, f32).
    B, C = 8, 16
    x = jax.random.normal(kx, (B, C), dtype=jnp.float32)
    y = jax.random.randint(ky, (B,), 0, C, dtype=jnp.int32)
    for targeted in (False, True):
        out = jax.block_until_ready(cw_loss(x, y, targeted=targeted))
        ref = _reference(x, y, targeted=targeted)
        assert out.shape == (B,)
        assert jnp.allclose(out, ref, atol=1e-5, rtol=1e-5), (out, ref)

    # Multi-tile path: batch tiling + class-axis reduction, bf16 streamed at
    # native width and cast to f32 in-register inside the kernel.
    B2, C2 = 64, 256
    x2 = jax.random.normal(kx2, (B2, C2), dtype=jnp.bfloat16)
    yl2 = jax.random.randint(ky2, (B2,), 0, C2, dtype=jnp.int32)
    out2 = jax.block_until_ready(
        cw_loss(x2, yl2, targeted=False, batch_tile=16, class_tile=128))
    ref2 = _reference(x2, yl2, targeted=False)
    assert out2.shape == (B2,)
    assert jnp.allclose(out2, ref2, atol=1e-5, rtol=1e-5), (out2, ref2)

    print("KERNEL_OK")
</pallas_src>

<mosaic_0001>
module attributes {stable_mosaic.version = 11 : i64} {
  func.func @_cw_loss_kernel(%arg0: i32, %arg1: i32, %arg2: memref<8x16xf32, #tpu.memory_space<vmem>>, %arg3: memref<8x1xi32, #tpu.memory_space<vmem>>, %arg4: memref<8x1xf32, #tpu.memory_space<vmem>>, %arg5: memref<8x1xf32, #tpu.memory_space<vmem>>, %arg6: memref<8x1xf32, #tpu.memory_space<vmem>>) attributes {dimension_semantics = [#tpu.dimension_semantics<parallel>, #tpu.dimension_semantics<arbitrary>], iteration_bounds = array<i64: 1, 1>, scalar_prefetch = 0 : i64, scratch_operands = 2 : i64, tpu.core_type = #tpu.core_type<tc>, window_params = [{transform_indices = @transform_0, window_bounds = array<i64: 8, 16>}, {transform_indices = @transform_1, window_bounds = array<i64: 8, 1>}, {transform_indices = @transform_2, window_bounds = array<i64: 8, 1>}]} {
    %c0_i32 = arith.constant 0 : i32
    %0 = arith.cmpi eq, %arg1, %c0_i32 : i32
    %1 = arith.extui %0 : i1 to i32
    %c0_i32_0 = arith.constant 0 : i32
    %2 = arith.cmpi ne, %1, %c0_i32_0 : i32
    scf.if %2 {
      %cst_19 = arith.constant 0xFF800000 : f32
      %32 = vector.broadcast %cst_19 : f32 to vector<8x1xf32>
      %c0_20 = arith.constant 0 : index
      %c0_21 = arith.constant 0 : index
      %33 = vector.load %arg5[%c0_20, %c0_21] : memref<8x1xf32, #tpu.memory_space<vmem>>, vector<8x1xf32>
      tpu.vector_store %arg5[%c0_20, %c0_21], %32 {strides = array<i32>} : memref<8x1xf32, #tpu.memory_space<vmem>>, vector<8x1xf32>,
      %cst_22 = arith.constant 0.000000e+00 : f32
      %34 = vector.broadcast %cst_22 : f32 to vector<8x1xf32>
      %c0_23 = arith.constant 0 : index
      %c0_24 = arith.constant 0 : index
      %35 = vector.load %arg6[%c0_23, %c0_24] : memref<8x1xf32, #tpu.memory_space<vmem>>, vector<8x1xf32>
      tpu.vector_store %arg6[%c0_23, %c0_24], %34 {strides = array<i32>} : memref<8x1xf32, #tpu.memory_space<vmem>>, vector<8x1xf32>,
    } else {
    }
    %c0 = arith.constant 0 : index
    %c0_1 = arith.constant 0 : index
    %3 = vector.load %arg2[%c0, %c0_1] : memref<8x16xf32, #tpu.memory_space<vmem>>, vector<8x16xf32>
    %c0_2 = arith.constant 0 : index
    %c0_3 = arith.constant 0 : index
    %4 = vector.load %arg3[%c0_2, %c0_3] : memref<8x1xi32, #tpu.memory_space<vmem>>, vector<8x1xi32>
    %c16_i32 = arith.constant 16 : i32
    %5 = arith.muli %arg1, %c16_i32 : i32
    %6 = tpu.iota {dimensions = array<i32: 1>} : vector<8x16xi32>
    %7 = vector.broadcast %5 : i32 to vector<8x16xi32>
    %8 = arith.addi %7, %6 : vector<8x16xi32>
    %9 = vector.broadcast %4 : vector<8x1xi32> to vector<8x16xi32>
    %10 = arith.cmpi eq, %8, %9 : vector<8x16xi32>
    %c16_i32_4 = arith.constant 16 : i32
    %11 = vector.broadcast %c16_i32_4 : i32 to vector<8x16xi32>
    %12 = arith.cmpi slt, %8, %11 : vector<8x16xi32>
    %c0_5 = arith.constant 0 : index
    %c0_6 = arith.constant 0 : index
    %13 = vector.load %arg6[%c0_5, %c0_6] : memref<8x1xf32, #tpu.memory_space<vmem>>, vector<8x1xf32>
    %cst = arith.constant 0.000000e+00 : f32
    %14 = vector.broadcast %cst : f32 to vector<8x16xf32>
    %15 = arith.select %10, %3, %14 : vector<8x16xi1>, vector<8x16xf32>
    %cst_7 = arith.constant dense<0.000000e+00> : vector<8xf32>
    %16 = vector.multi_reduction <add>, %15, %cst_7 [1] : vector<8x16xf32> to vector<8xf32>
    %17 = vector.shape_cast %16 : vector<8xf32> to vector<8x1xf32>
    %18 = arith.addf %13, %17 : vector<8x1xf32>
    %c0_8 = arith.constant 0 : index
    %c0_9 = arith.constant 0 : index
    %19 = vector.load %arg6[%c0_8, %c0_9] : memref<8x1xf32, #tpu.memory_space<vmem>>, vector<8x1xf32>
    tpu.vector_store %arg6[%c0_8, %c0_9], %18 {strides = array<i32>} : memref<8x1xf32, #tpu.memory_space<vmem>>, vector<8x1xf32>,
    %cst_10 = arith.constant dense<true> : vector<8x16xi1>
    %20 = arith.xori %10, %cst_10 : vector<8x16xi1>
    %21 = arith.andi %12, %20 : vector<8x16xi1>
    %cst_11 = arith.constant 0xFF800000 : f32
    %22 = vector.broadcast %cst_11 : f32 to vector<8x16xf32>
    %23 = arith.select %21, %3, %22 : vector<8x16xi1>, vector<8x16xf32>
    %c0_12 = arith.constant 0 : index
    %c0_13 = arith.constant 0 : index
    %24 = vector.load %arg5[%c0_12, %c0_13] : memref<8x1xf32, #tpu.memory_space<vmem>>, vector<8x1xf32>
    %cst_14 = arith.constant dense<0xFF800000> : vector<8xf32>
    %25 = vector.multi_reduction <maximumf>, %23, %cst_14 [1] : vector<8x16xf32> to vector<8xf32>
    %26 = vector.shape_cast %25 : vector<8xf32> to vector<8x1xf32>
    %27 = arith.maximumf %24, %26 : vector<8x1xf32>
    %c0_15 = arith.constant 0 : index
    %c0_16 = arith.constant 0 : index
    %28 = vector.load %arg5[%c0_15, %c0_16] : memref<8x1xf32, #tpu.memory_space<vmem>>, vector<8x1xf32>
    tpu.vector_store %arg5[%c0_15, %c0_16], %27 {strides = array<i32>} : memref<8x1xf32, #tpu.memory_space<vmem>>, vector<8x1xf32>,
    %c0_i32_17 = arith.constant 0 : i32
    %29 = arith.cmpi eq, %arg1, %c0_i32_17 : i32
    %30 = arith.extui %29 : i1 to i32
    %c0_i32_18 = arith.constant 0 : i32
    %31 = arith.cmpi ne, %30, %c0_i32_18 : i32
    scf.if %31 {
      %c0_19 = arith.constant 0 : index
      %c0_20 = arith.constant 0 : index
      %32 = vector.load %arg5[%c0_19, %c0_20] : memref<8x1xf32, #tpu.memory_space<vmem>>, vector<8x1xf32>
      %c0_21 = arith.constant 0 : index
      %c0_22 = arith.constant 0 : index
      %33 = vector.load %arg6[%c0_21, %c0_22] : memref<8x1xf32, #tpu.memory_space<vmem>>, vector<8x1xf32>
      %34 = arith.subf %32, %33 : vector<8x1xf32>
      %c0_23 = arith.constant 0 : index
      %c0_24 = arith.constant 0 : index
      %35 = vector.load %arg4[%c0_23, %c0_24] : memref<8x1xf32, #tpu.memory_space<vmem>>, vector<8x1xf32>
      tpu.vector_store %arg4[%c0_23, %c0_24], %34 {strides = array<i32>} : memref<8x1xf32, #tpu.memory_space<vmem>>, vector<8x1xf32>,
    } else {
    }
    return
  }
  func.func @transform_0(%arg0: i32, %arg1: i32) -> (i32, i32) {
    %c0_i32 = arith.constant 0 : i32
    return %arg0, %arg1 : i32, i32
  }
  func.func @transform_1(%arg0: i32, %arg1: i32) -> (i32, i32) {
    %c0_i32 = arith.constant 0 : i32
    %c0_i32_0 = arith.constant 0 : i32
    return %arg0, %c0_i32 : i32, i32
  }
  func.func @transform_2(%arg0: i32, %arg1: i32) -> (i32, i32) {
    %c0_i32 = arith.constant 0 : i32
    %c0_i32_0 = arith.constant 0 : i32
    return %arg0, %c0_i32 : i32, i32
  }
}

</mosaic_0001>

<llo_original>
// kernel: tpu_custom_call.1
$region0: #{tpu_custom_call.1}
  #allocation0 [shape = 'u32[]', space=smem, size = 0x4, offset = 0x4, fixed_abs, tag = 'smem constant byte address 0x4 - core index']
  #allocation1 [shape = 'u32[144,128]{1,0:T(1,128)}', space=vmem, size = 0x12000, scoped, tag = 'internal scratch']
  #allocation2 [shape = 'f32[8,1]{1,0:T(8,128)}', space=vmem, size = 0x1000, scoped, tag = 'scratch operand']
  #allocation3 [shape = 'f32[8,1]{1,0:T(8,128)}', space=vmem, size = 0x1000, scoped, tag = 'scratch operand']
  %s0 = inlined_call_operand.vmem [shape: f32[8,16], index: 0, kind: input, shape index: {}]
  %s1 = inlined_call_operand.vmem [shape: s32[8,1], index: 1, kind: input, shape index: {}]
  %s2 = inlined_call_operand.vmem [shape: f32[8,1], index: 2, kind: output, shape index: {}]
  %s3 = sld [smem:[#allocation0]]
  $region26: #{tpu_custom_call.1} parent=0
    _
  %s5 = ssub.s32 1, %s3
  %s6 = scalar_select 0, %s5, %s3
  // Predicated region
  $region2: #{tpu_custom_call.1} parent=0 // pred_check
    _
  $region3: #{tpu_custom_call.1} parent=0 // pred_check_branch
    %8 = sbr.rel (0) target = $region5
  $region4: #{tpu_custom_call.1} parent=0 // pred_region
    _
  $region5: #{tpu_custom_call.1} parent=0 // pred_fallthru
    _
  // Predicated region
  $region6: #{tpu_custom_call.1} parent=0 // pred_check
    _
  $region7: #{tpu_custom_call.1} parent=0 // pred_check_branch
    %10 = sbr.rel (0) target = $region9
  $region8: #{tpu_custom_call.1} parent=0 // pred_region
    _
  $region9: #{tpu_custom_call.1} parent=0 // pred_fallthru
    _
  %p11 = scmp.eq.s32.totalorder 0, 0
  // Predicated region
  $region10: #{tpu_custom_call.1} parent=0 // pred_check
    %p12 = pneg %p11
  $region11: #{tpu_custom_call.1} parent=0 // pred_check_branch
    %14 = sbr.rel (%p12) target = $region13
  $region12: #{tpu_custom_call.1} parent=0 // pred_region
    %vm15 = vcmask 7168
    %16 = vst.msk [vmem:[#allocation2] sm:$0xff] %vm15, -inf
    %17 = vst.msk [vmem:[#allocation3] sm:$0xff] %vm15, 0.0
  $region13: #{tpu_custom_call.1} parent=0 // pred_fallthru
    _
  %v18 = vld [vmem:[%s0] sm:$0xff]
  %v19 = vld [vmem:[%s1] sm:$0xff]
  %s20 = smul.u32 0, 16
  %v21 = vlaneseq
  %v22 = vand.u32 %v21, 127
  %v23 = vstv %s20
  %v24 = vadd.s32 %v23, %v22
  %25 = vset.pattern.permute.xlu0 0
  %26 = vperm.xlu0 %25, %v19
  %v27 = vpop.permute.xlu0 %26
  %vm28 = vcmp.eq.s32.totalorder %v24, %v27
  %vm29 = vcmp.lt.s32.totalorder %v24, 16
  %v30 = vld [vmem:[#allocation3] sm:$0xff]
  %v31 = vsel %vm28, %v18, 0.0
  %vm32 = vcmask 130048
  %v33 = vsel %vm32, %v31, 0.0
  %34 = vadd.xlane.f32.xlu0 %v33
  %v35 = vpop.xlane.xlu0 %34
  %v36 = vadd.f32 %v30, %v35
  %vm37 = vcmask 7168
  %38 = vst.msk [vmem:[#allocation3] sm:$0xff] %vm37, %v36
  %vm39 = vmxor %vm28, 1
  %vm40 = vmand %vm29, %vm39
  %v41 = vsel %vm40, %v18, -inf
  %v42 = vld [vmem:[#allocation2] sm:$0xff]
  %v43 = vsel %vm32, %v41, -inf
  %44 = vmax.xlane.f32.xlu0 %v43
  %v45 = vpop.xlane.xlu0 %44
  %v46 = vmax.f32 %v42, %v45
  %47 = vst.msk [vmem:[#allocation2] sm:$0xff] %vm37, %v46
  // Predicated region
  $region14: #{tpu_custom_call.1} parent=0 // pred_check
    %p48 = pneg %p11
  $region15: #{tpu_custom_call.1} parent=0 // pred_check_branch
    %50 = sbr.rel (%p48) target = $region17
  $region16: #{tpu_custom_call.1} parent=0 // pred_region
    %v51 = vld [vmem:[#allocation2] sm:$0xff]
    %v52 = vld [vmem:[#allocation3] sm:$0xff]
    %v53 = vsub.f32 %v51, %v52
    %54 = vst.msk [vmem:[%s2] sm:$0xff] %vm37, %v53
  $region17: #{tpu_custom_call.1} parent=0 // pred_fallthru
    _
  // Predicated region
  $region18: #{tpu_custom_call.1} parent=0 // pred_check
    _
  $region19: #{tpu_custom_call.1} parent=0 // pred_check_branch
    %56 = sbr.rel (0) target = $region21
  $region20: #{tpu_custom_call.1} parent=0 // pred_region
    _
  $region21: #{tpu_custom_call.1} parent=0 // pred_fallthru
    _
  // Predicated region
  $region22: #{tpu_custom_call.1} parent=0 // pred_check
    _
  $region23: #{tpu_custom_call.1} parent=0 // pred_check_branch
    %58 = sbr.rel (0) target = $region25
  $region24: #{tpu_custom_call.1} parent=0 // pred_region
    _
  $region25: #{tpu_custom_call.1} parent=0 // pred_fallthru
    _

</llo_original>
